<compile_context>
chip_gen: v6e
topology: v6e:2x2x1
jax: 0.10.0
libtpu: 0.0.40
codegen_flags: <defaults>
</compile_context>

<pallas_src>
import jax
import jax.numpy as jnp
from jax.experimental import pallas as pl
from jax.experimental.pallas import tpu as pltpu


def mlp_kernel(xt_ref,      # (2, bm)      input, batch on lanes
               w1t_ref,     # (64, 2)      W1^T
               b1_ref,      # (64, 1)
               wmid_ref,    # (4, 64, 64)  W2^T..W5^T (f32 or bf16)
               bmid_ref,    # (4, 64, 1)
               w6_ref,      # (64, 1)
               b6_ref,      # (1, 1)
               o_ref):      # (1, bm)      lane-dense output row
    def swish(h):
        # x*sigmoid(x) == 0.5*x*(1 + tanh(x/2)); single EUP op per element.
        return 0.5 * h * (1.0 + jnp.tanh(0.5 * h))

    xt = xt_ref[...]                                   # (2, bm) f32
    w1t = w1t_ref[...]                                 # (64, 2) f32

    # ---- Layer 1 on the VPU (K=2 would be ~1% MXU utilization) ----
    h = (w1t[:, 0:1] * xt[0:1, :]
         + w1t[:, 1:2] * xt[1:2, :]
         + b1_ref[...])                                # (64, bm) f32
    h = swish(h)

    # ---- Layers 2..5 on the MXU: (64,64) @ (64,bm), N = bm (lane-dense) ----
    mm_dtype = wmid_ref.dtype                          # f32 or bf16
    for i in range(4):                                 # static unroll
        h = jnp.dot(wmid_ref[i], h.astype(mm_dtype),
                    preferred_element_type=jnp.float32) + bmid_ref[i]
        h = swish(h)                                   # (64, bm) f32

    # ---- Layer 6 on VPU + sublane reduce (N=1 would waste the MXU) ----
    out = jnp.sum(h * w6_ref[...], axis=0, keepdims=True) + b6_ref[...]
    o_ref[...] = out.astype(o_ref.dtype)               # (1, bm) unmasked store


def mlp_forward(x, params, *, bm=1024, use_bf16=False):
    """x: (B, 2) f32.  params: [(W, b)] with W: (in, out), b: (1, out)."""
    B = x.shape[0]
    if B <= bm:
        bm = B
    else:
        bm = max(128, (bm // 128) * 128)     # keep lane dim 128-aligned
    grid = (pl.cdiv(B, bm),)

    (w1, b1), (w2, b2), (w3, b3), (w4, b4), (w5, b5), (w6, b6) = params

    # Wrapper-side layout plumbing (transpose/pack) — no compute hoisted.
    xt = x.T                                                   # (2, B)
    w1t = w1.T                                                 # (64, 2)
    b1c = b1.reshape(64, 1)                                    # (64, 1)
    wdt = jnp.bfloat16 if use_bf16 else jnp.float32
    wmid = jnp.stack([w2.T, w3.T, w4.T, w5.T]).astype(wdt)     # (4, 64, 64)
    bmid = jnp.stack([b2, b3, b4, b5]).reshape(4, 64, 1)       # (4, 64, 1)
    w6c = w6.reshape(64, 1)                                    # (64, 1)
    b6s = b6.reshape(1, 1)                                     # (1, 1)

    in_specs = [
        pl.BlockSpec((2, bm), lambda i: (0, i)),               # x^T tile
        pl.BlockSpec((64, 2), lambda i: (0, 0)),               # W1^T
        pl.BlockSpec((64, 1), lambda i: (0, 0)),               # b1
        pl.BlockSpec((4, 64, 64), lambda i: (0, 0, 0)),        # W2..5^T slab
        pl.BlockSpec((4, 64, 1), lambda i: (0, 0, 0)),         # b2..5 slab
        pl.BlockSpec((64, 1), lambda i: (0, 0)),               # w6
        pl.BlockSpec((1, 1), lambda i: (0, 0)),                # b6
    ]
    out_spec = pl.BlockSpec((1, bm), lambda i: (0, i))         # lane-dense row

    out_row = pl.pallas_call(
        mlp_kernel,
        out_shape=jax.ShapeDtypeStruct((1, B), jnp.float32),
        grid_spec=pltpu.PrefetchScalarGridSpec(
            num_scalar_prefetch=0,
            grid=grid,
            in_specs=in_specs,
            out_specs=out_spec,
        ),
        compiler_params=pltpu.CompilerParams(
            dimension_semantics=("parallel",),
            vmem_limit_bytes=32 * 1024 * 1024,
        ),
    )(xt, w1t, b1c, wmid, bmid, w6c, b6s)

    return out_row.reshape(B, 1)


def init_params(key):
    """Deterministic init matching PyTorch nn.Linear default U[-1/sqrt(fan_in), +]."""
    dims = [(2, 64), (64, 64), (64, 64), (64, 64), (64, 64), (64, 1)]
    params = []
    for (fan_in, fan_out) in dims:
        key, kw, kb = jax.random.split(key, 3)
        bound = 1.0 / jnp.sqrt(fan_in)
        w = jax.random.uniform(kw, (fan_in, fan_out), jnp.float32, -bound, bound)
        b = jax.random.uniform(kb, (1, fan_out), jnp.float32, -bound, bound)
        params.append((w, b))
    return params


def mlp_reference(x, params):
    h = x
    for i, (w, b) in enumerate(params):
        h = h @ w + b
        if i < len(params) - 1:
            h = h * jax.nn.sigmoid(h)
    return h


if __name__ == "__main__":
    key = jax.random.PRNGKey(0)
    key, kx = jax.random.split(key)
    params = init_params(key)

    # 1) Small-shape check (module operates on (batch, 2) points).
    B = 8
    x = jax.random.normal(kx, (B, 2), jnp.float32)
    out = jax.block_until_ready(mlp_forward(x, params))
    ref = mlp_reference(x, params)
    assert out.shape == (B, 1)
    assert jnp.allclose(out, ref, atol=1e-4, rtol=1e-4), "f32 mismatch vs reference"

    # 2) Multi-step grid with a partial last tile (exercises pipelined path,
    #    megacore sharding on v7x, and output masking of the ragged tile).
    B2 = 300
    x2 = jax.random.normal(jax.random.PRNGKey(1), (B2, 2), jnp.float32)
    out2 = jax.block_until_ready(mlp_forward(x2, params, bm=128))
    ref2 = mlp_reference(x2, params)
    assert jnp.allclose(out2, ref2, atol=1e-4, rtol=1e-4), "tiled f32 mismatch"

    # 3) bf16 matmul-operand path (v6e/v7x MXU lever); accumulation stays f32.
    out3 = jax.block_until_ready(mlp_forward(x2, params, bm=128, use_bf16=True))
    assert jnp.allclose(out3, ref2, atol=1e-1, rtol=1e-1), "bf16 path mismatch"

    print("KERNEL_OK")
</pallas_src>

<mosaic_0001>
module attributes {stable_mosaic.version = 11 : i64} {
  func.func @mlp_kernel(%arg0: i32, %arg1: memref<2x8xf32, #tpu.memory_space<vmem>>, %arg2: memref<64x2xf32, #tpu.memory_space<vmem>>, %arg3: memref<64x1xf32, #tpu.memory_space<vmem>>, %arg4: memref<4x64x64xf32, #tpu.memory_space<vmem>>, %arg5: memref<4x64x1xf32, #tpu.memory_space<vmem>>, %arg6: memref<64x1xf32, #tpu.memory_space<vmem>>, %arg7: memref<1x1xf32, #tpu.memory_space<vmem>>, %arg8: memref<1x8xf32, #tpu.memory_space<vmem>>) attributes {dimension_semantics = [#tpu.dimension_semantics<parallel>], iteration_bounds = array<i64: 1>, scalar_prefetch = 0 : i64, scratch_operands = 0 : i64, tpu.core_type = #tpu.core_type<tc>, window_params = [{transform_indices = @transform_0, window_bounds = array<i64: 2, 8>}, {pipeline_mode = #tpu.pipeline_mode<synchronous>, transform_indices = @transform_1, window_bounds = array<i64: 64, 2>}, {pipeline_mode = #tpu.pipeline_mode<synchronous>, transform_indices = @transform_2, window_bounds = array<i64: 64, 1>}, {pipeline_mode = #tpu.pipeline_mode<synchronous>, transform_indices = @transform_3, window_bounds = array<i64: 4, 64, 64>}, {pipeline_mode = #tpu.pipeline_mode<synchronous>, transform_indices = @transform_4, window_bounds = array<i64: 4, 64, 1>}, {pipeline_mode = #tpu.pipeline_mode<synchronous>, transform_indices = @transform_5, window_bounds = array<i64: 64, 1>}, {pipeline_mode = #tpu.pipeline_mode<synchronous>, transform_indices = @transform_6, window_bounds = array<i64: 1, 1>}, {transform_indices = @transform_7, window_bounds = array<i64: 1, 8>}]} {
    %c0 = arith.constant 0 : index
    %c0_0 = arith.constant 0 : index
    %0 = vector.load %arg1[%c0, %c0_0] : memref<2x8xf32, #tpu.memory_space<vmem>>, vector<2x8xf32>
    %c0_1 = arith.constant 0 : index
    %c0_2 = arith.constant 0 : index
    %1 = vector.load %arg2[%c0_1, %c0_2] : memref<64x2xf32, #tpu.memory_space<vmem>>, vector<64x2xf32>
    %2 = vector.extract_strided_slice %1 {offsets = [0, 0], sizes = [64, 1], strides = [1, 1]} : vector<64x2xf32> to vector<64x1xf32>
    %3 = vector.extract_strided_slice %0 {offsets = [0, 0], sizes = [1, 8], strides = [1, 1]} : vector<2x8xf32> to vector<1x8xf32>
    %4 = vector.broadcast %2 : vector<64x1xf32> to vector<64x8xf32>
    %5 = vector.broadcast %3 : vector<1x8xf32> to vector<64x8xf32>
    %6 = arith.mulf %4, %5 : vector<64x8xf32>
    %7 = vector.extract_strided_slice %1 {offsets = [0, 1], sizes = [64, 1], strides = [1, 1]} : vector<64x2xf32> to vector<64x1xf32>
    %8 = vector.extract_strided_slice %0 {offsets = [1, 0], sizes = [1, 8], strides = [1, 1]} : vector<2x8xf32> to vector<1x8xf32>
    %9 = vector.broadcast %7 : vector<64x1xf32> to vector<64x8xf32>
    %10 = vector.broadcast %8 : vector<1x8xf32> to vector<64x8xf32>
    %11 = arith.mulf %9, %10 : vector<64x8xf32>
    %12 = arith.addf %6, %11 : vector<64x8xf32>
    %c0_3 = arith.constant 0 : index
    %c0_4 = arith.constant 0 : index
    %13 = vector.load %arg3[%c0_3, %c0_4] : memref<64x1xf32, #tpu.memory_space<vmem>>, vector<64x1xf32>
    %14 = vector.broadcast %13 : vector<64x1xf32> to vector<64x8xf32>
    %15 = arith.addf %12, %14 : vector<64x8xf32>
    %cst = arith.constant 5.000000e-01 : f32
    %16 = vector.broadcast %cst : f32 to vector<64x8xf32>
    %17 = arith.mulf %16, %15 : vector<64x8xf32>
    %cst_5 = arith.constant 5.000000e-01 : f32
    %18 = vector.broadcast %cst_5 : f32 to vector<64x8xf32>
    %19 = arith.mulf %18, %15 : vector<64x8xf32>
    %20 = math.tanh %19 : vector<64x8xf32>
    %cst_6 = arith.constant 1.000000e+00 : f32
    %21 = vector.broadcast %cst_6 : f32 to vector<64x8xf32>
    %22 = arith.addf %21, %20 : vector<64x8xf32>
    %23 = arith.mulf %17, %22 : vector<64x8xf32>
    %c0_7 = arith.constant 0 : index
    %c0_8 = arith.constant 0 : index
    %c0_9 = arith.constant 0 : index
    %24 = vector.load %arg4[%c0_7, %c0_8, %c0_9] : memref<4x64x64xf32, #tpu.memory_space<vmem>>, vector<1x64x64xf32>
    %25 = vector.shape_cast %24 : vector<1x64x64xf32> to vector<64x64xf32>
    %cst_10 = arith.constant dense<0.000000e+00> : vector<64x8xf32>
    %26 = tpu.matmul %25, %23, %cst_10 {dimension_numbers = #tpu.dot_dimension_numbers<[1], [0], [0], [1], [0, 0, 1, 1], [], []>} : vector<64x64xf32>, vector<64x8xf32>, vector<64x8xf32> -> vector<64x8xf32>
    %c0_11 = arith.constant 0 : index
    %c0_12 = arith.constant 0 : index
    %c0_13 = arith.constant 0 : index
    %27 = vector.load %arg5[%c0_11, %c0_12, %c0_13] : memref<4x64x1xf32, #tpu.memory_space<vmem>>, vector<1x64x1xf32>
    %28 = vector.shape_cast %27 : vector<1x64x1xf32> to vector<64x1xf32>
    %29 = vector.broadcast %28 : vector<64x1xf32> to vector<64x8xf32>
    %30 = arith.addf %26, %29 : vector<64x8xf32>
    %cst_14 = arith.constant 5.000000e-01 : f32
    %31 = vector.broadcast %cst_14 : f32 to vector<64x8xf32>
    %32 = arith.mulf %31, %30 : vector<64x8xf32>
    %cst_15 = arith.constant 5.000000e-01 : f32
    %33 = vector.broadcast %cst_15 : f32 to vector<64x8xf32>
    %34 = arith.mulf %33, %30 : vector<64x8xf32>
    %35 = math.tanh %34 : vector<64x8xf32>
    %cst_16 = arith.constant 1.000000e+00 : f32
    %36 = vector.broadcast %cst_16 : f32 to vector<64x8xf32>
    %37 = arith.addf %36, %35 : vector<64x8xf32>
    %38 = arith.mulf %32, %37 : vector<64x8xf32>
    %c1 = arith.constant 1 : index
    %c0_17 = arith.constant 0 : index
    %c0_18 = arith.constant 0 : index
    %39 = vector.load %arg4[%c1, %c0_17, %c0_18] : memref<4x64x64xf32, #tpu.memory_space<vmem>>, vector<1x64x64xf32>
    %40 = vector.shape_cast %39 : vector<1x64x64xf32> to vector<64x64xf32>
    %cst_19 = arith.constant dense<0.000000e+00> : vector<64x8xf32>
    %41 = tpu.matmul %40, %38, %cst_19 {dimension_numbers = #tpu.dot_dimension_numbers<[1], [0], [0], [1], [0, 0, 1, 1], [], []>} : vector<64x64xf32>, vector<64x8xf32>, vector<64x8xf32> -> vector<64x8xf32>
    %c1_20 = arith.constant 1 : index
    %c0_21 = arith.constant 0 : index
    %c0_22 = arith.constant 0 : index
    %42 = vector.load %arg5[%c1_20, %c0_21, %c0_22] : memref<4x64x1xf32, #tpu.memory_space<vmem>>, vector<1x64x1xf32>
    %43 = vector.shape_cast %42 : vector<1x64x1xf32> to vector<64x1xf32>
    %44 = vector.broadcast %43 : vector<64x1xf32> to vector<64x8xf32>
    %45 = arith.addf %41, %44 : vector<64x8xf32>
    %cst_23 = arith.constant 5.000000e-01 : f32
    %46 = vector.broadcast %cst_23 : f32 to vector<64x8xf32>
    %47 = arith.mulf %46, %45 : vector<64x8xf32>
    %cst_24 = arith.constant 5.000000e-01 : f32
    %48 = vector.broadcast %cst_24 : f32 to vector<64x8xf32>
    %49 = arith.mulf %48, %45 : vector<64x8xf32>
    %50 = math.tanh %49 : vector<64x8xf32>
    %cst_25 = arith.constant 1.000000e+00 : f32
    %51 = vector.broadcast %cst_25 : f32 to vector<64x8xf32>
    %52 = arith.addf %51, %50 : vector<64x8xf32>
    %53 = arith.mulf %47, %52 : vector<64x8xf32>
    %c2 = arith.constant 2 : index
    %c0_26 = arith.constant 0 : index
    %c0_27 = arith.constant 0 : index
    %54 = vector.load %arg4[%c2, %c0_26, %c0_27] : memref<4x64x64xf32, #tpu.memory_space<vmem>>, vector<1x64x64xf32>
    %55 = vector.shape_cast %54 : vector<1x64x64xf32> to vector<64x64xf32>
    %cst_28 = arith.constant dense<0.000000e+00> : vector<64x8xf32>
    %56 = tpu.matmul %55, %53, %cst_28 {dimension_numbers = #tpu.dot_dimension_numbers<[1], [0], [0], [1], [0, 0, 1, 1], [], []>} : vector<64x64xf32>, vector<64x8xf32>, vector<64x8xf32> -> vector<64x8xf32>
    %c2_29 = arith.constant 2 : index
    %c0_30 = arith.constant 0 : index
    %c0_31 = arith.constant 0 : index
    %57 = vector.load %arg5[%c2_29, %c0_30, %c0_31] : memref<4x64x1xf32, #tpu.memory_space<vmem>>, vector<1x64x1xf32>
    %58 = vector.shape_cast %57 : vector<1x64x1xf32> to vector<64x1xf32>
    %59 = vector.broadcast %58 : vector<64x1xf32> to vector<64x8xf32>
    %60 = arith.addf %56, %59 : vector<64x8xf32>
    %cst_32 = arith.constant 5.000000e-01 : f32
    %61 = vector.broadcast %cst_32 : f32 to vector<64x8xf32>
    %62 = arith.mulf %61, %60 : vector<64x8xf32>
    %cst_33 = arith.constant 5.000000e-01 : f32
    %63 = vector.broadcast %cst_33 : f32 to vector<64x8xf32>
    %64 = arith.mulf %63, %60 : vector<64x8xf32>
    %65 = math.tanh %64 : vector<64x8xf32>
    %cst_34 = arith.constant 1.000000e+00 : f32
    %66 = vector.broadcast %cst_34 : f32 to vector<64x8xf32>
    %67 = arith.addf %66, %65 : vector<64x8xf32>
    %68 = arith.mulf %62, %67 : vector<64x8xf32>
    %c3 = arith.constant 3 : index
    %c0_35 = arith.constant 0 : index
    %c0_36 = arith.constant 0 : index
    %69 = vector.load %arg4[%c3, %c0_35, %c0_36] : memref<4x64x64xf32, #tpu.memory_space<vmem>>, vector<1x64x64xf32>
    %70 = vector.shape_cast %69 : vector<1x64x64xf32> to vector<64x64xf32>
    %cst_37 = arith.constant dense<0.000000e+00> : vector<64x8xf32>
    %71 = tpu.matmul %70, %68, %cst_37 {dimension_numbers = #tpu.dot_dimension_numbers<[1], [0], [0], [1], [0, 0, 1, 1], [], []>} : vector<64x64xf32>, vector<64x8xf32>, vector<64x8xf32> -> vector<64x8xf32>
    %c3_38 = arith.constant 3 : index
    %c0_39 = arith.constant 0 : index
    %c0_40 = arith.constant 0 : index
    %72 = vector.load %arg5[%c3_38, %c0_39, %c0_40] : memref<4x64x1xf32, #tpu.memory_space<vmem>>, vector<1x64x1xf32>
    %73 = vector.shape_cast %72 : vector<1x64x1xf32> to vector<64x1xf32>
    %74 = vector.broadcast %73 : vector<64x1xf32> to vector<64x8xf32>
    %75 = arith.addf %71, %74 : vector<64x8xf32>
    %cst_41 = arith.constant 5.000000e-01 : f32
    %76 = vector.broadcast %cst_41 : f32 to vector<64x8xf32>
    %77 = arith.mulf %76, %75 : vector<64x8xf32>
    %cst_42 = arith.constant 5.000000e-01 : f32
    %78 = vector.broadcast %cst_42 : f32 to vector<64x8xf32>
    %79 = arith.mulf %78, %75 : vector<64x8xf32>
    %80 = math.tanh %79 : vector<64x8xf32>
    %cst_43 = arith.constant 1.000000e+00 : f32
    %81 = vector.broadcast %cst_43 : f32 to vector<64x8xf32>
    %82 = arith.addf %81, %80 : vector<64x8xf32>
    %83 = arith.mulf %77, %82 : vector<64x8xf32>
    %c0_44 = arith.constant 0 : index
    %c0_45 = arith.constant 0 : index
    %84 = vector.load %arg6[%c0_44, %c0_45] : memref<64x1xf32, #tpu.memory_space<vmem>>, vector<64x1xf32>
    %85 = vector.broadcast %84 : vector<64x1xf32> to vector<64x8xf32>
    %86 = arith.mulf %83, %85 : vector<64x8xf32>
    %cst_46 = arith.constant dense<0.000000e+00> : vector<8xf32>
    %87 = vector.multi_reduction <add>, %86, %cst_46 [0] : vector<64x8xf32> to vector<8xf32>
    %88 = vector.shape_cast %87 : vector<8xf32> to vector<1x8xf32>
    %c0_47 = arith.constant 0 : index
    %c0_48 = arith.constant 0 : index
    %89 = vector.load %arg7[%c0_47, %c0_48] : memref<1x1xf32, #tpu.memory_space<vmem>>, vector<1x1xf32>
    %90 = vector.broadcast %89 : vector<1x1xf32> to vector<1x8xf32>
    %91 = arith.addf %88, %90 : vector<1x8xf32>
    %c0_49 = arith.constant 0 : index
    %c0_50 = arith.constant 0 : index
    %92 = vector.load %arg8[%c0_49, %c0_50] : memref<1x8xf32, #tpu.memory_space<vmem>>, vector<1x8xf32>
    tpu.vector_store %arg8[%c0_49, %c0_50], %91 {strides = array<i32>} : memref<1x8xf32, #tpu.memory_space<vmem>>, vector<1x8xf32>,
    return
  }
  func.func @transform_0(%arg0: i32) -> (i32, i32) {
    %c0_i32 = arith.constant 0 : i32
    %c0_i32_0 = arith.constant 0 : i32
    return %c0_i32, %arg0 : i32, i32
  }
  func.func @transform_1(%arg0: i32) -> (i32, i32) {
    %c0_i32 = arith.constant 0 : i32
    %c0_i32_0 = arith.constant 0 : i32
    %c0_i32_1 = arith.constant 0 : i32
    return %c0_i32, %c0_i32_0 : i32, i32
  }
  func.func @transform_2(%arg0: i32) -> (i32, i32) {
    %c0_i32 = arith.constant 0 : i32
    %c0_i32_0 = arith.constant 0 : i32
    %c0_i32_1 = arith.constant 0 : i32
    return %c0_i32, %c0_i32_0 : i32, i32
  }
  func.func @transform_3(%arg0: i32) -> (i32, i32, i32) {
    %c0_i32 = arith.constant 0 : i32
    %c0_i32_0 = arith.constant 0 : i32
    %c0_i32_1 = arith.constant 0 : i32
    %c0_i32_2 = arith.constant 0 : i32
    return %c0_i32, %c0_i32_0, %c0_i32_1 : i32, i32, i32
  }
  func.func @transform_4(%arg0: i32) -> (i32, i32, i32) {
    %c0_i32 = arith.constant 0 : i32
    %c0_i32_0 = arith.constant 0 : i32
    %c0_i32_1 = arith.constant 0 : i32
    %c0_i32_2 = arith.constant 0 : i32
    return %c0_i32, %c0_i32_0, %c0_i32_1 : i32, i32, i32
  }
  func.func @transform_5(%arg0: i32) -> (i32, i32) {
    %c0_i32 = arith.constant 0 : i32
    %c0_i32_0 = arith.constant 0 : i32
    %c0_i32_1 = arith.constant 0 : i32
    return %c0_i32, %c0_i32_0 : i32, i32
  }
  func.func @transform_6(%arg0: i32) -> (i32, i32) {
    %c0_i32 = arith.constant 0 : i32
    %c0_i32_0 = arith.constant 0 : i32
    %c0_i32_1 = arith.constant 0 : i32
    return %c0_i32, %c0_i32_0 : i32, i32
  }
  func.func @transform_7(%arg0: i32) -> (i32, i32) {
    %c0_i32 = arith.constant 0 : i32
    %c0_i32_0 = arith.constant 0 : i32
    return %c0_i32, %arg0 : i32, i32
  }
}

</mosaic_0001>

<llo_original>
// kernel: tpu_custom_call.1
$region0: #{tpu_custom_call.1}
  #allocation0 [shape = 'u32[]', space=smem, size = 0x4, offset = 0x4, fixed_abs, tag = 'smem constant byte address 0x4 - core index']
  #allocation1 [shape = 'u32[144,128]{1,0:T(1,128)}', space=vmem, size = 0x12000, scoped, tag = 'internal scratch']
  #allocation2 [shape = 'f32[1,1]{1,0:T(1,128)S(1)}', space=vmem, size = 0x200, scoped, tag = 'scoped memory for tpu_custom_call.1']
  %s0 = inlined_call_operand.vmem [shape: f32[2,8], index: 0, kind: input, shape index: {}]
  %s1 = inlined_call_operand.vmem [shape: f32[64,2], index: 1, kind: input, shape index: {}]
  %s2 = inlined_call_operand.vmem [shape: f32[64,1], index: 2, kind: input, shape index: {}]
  %s3 = inlined_call_operand.vmem [shape: f32[4,64,64], index: 3, kind: input, shape index: {}]
  %s4 = inlined_call_operand.vmem [shape: f32[4,64,1], index: 4, kind: input, shape index: {}]
  %s5 = inlined_call_operand.vmem [shape: f32[64,1], index: 5, kind: input, shape index: {}]
  %s6 = inlined_call_operand.<no memory space> [shape: f32[1,1], index: 6, kind: input, shape index: {}]
  %s7 = inlined_call_operand.hbm [shape: f32[1,8], index: 7, kind: output, shape index: {}]
  %s8 = sld [smem:[#allocation0]]
  $region38: #{tpu_custom_call.1} parent=0
    _
  %s10 = ssub.s32 1, %s8
  %s11 = scalar_select 0, %s10, %s8
  %v12 = vstv %s6
  %13 = vst [vmem:[#allocation2] sm:$0x1] %v12
  $region1: #{tpu_custom_call.1} parent=0
    #allocation3 [shape = 'u8[512]{0}', space=vmem, size = 0x400, scoped, tag = 'output window, operand 0, single buffered']
    #allocation4 [shape = 's32[1]{0}', space=sflag, size = 0x4, scoped, tag = 'scoped memory for tpu_custom_call.1']
    %14 = vsyncpa [#allocation4], 0
    // Predicated region
    $region2: #{tpu_custom_call.1} parent=1 // pred_check
      _
    $region3: #{tpu_custom_call.1} parent=1 // pred_check_branch
      %16 = sbr.rel (0) target = $region5
    $region4: #{tpu_custom_call.1} parent=1 // pred_region
      _
    $region5: #{tpu_custom_call.1} parent=1 // pred_fallthru
      _
    // Predicated region
    $region6: #{tpu_custom_call.1} parent=1 // pred_check
      _
    $region7: #{tpu_custom_call.1} parent=1 // pred_check_branch
      %18 = sbr.rel (0) target = $region9
    $region8: #{tpu_custom_call.1} parent=1 // pred_region
      _
    $region9: #{tpu_custom_call.1} parent=1 // pred_fallthru
      _
    // Predicated region
    $region10: #{tpu_custom_call.1} parent=1 // pred_check
      _
    $region11: #{tpu_custom_call.1} parent=1 // pred_check_branch
      %20 = sbr.rel (0) target = $region13
    $region12: #{tpu_custom_call.1} parent=1 // pred_region
      _
    $region13: #{tpu_custom_call.1} parent=1 // pred_fallthru
      _
    // Predicated region
    $region14: #{tpu_custom_call.1} parent=1 // pred_check
      _
    $region15: #{tpu_custom_call.1} parent=1 // pred_check_branch
      %22 = sbr.rel (0) target = $region17
    $region16: #{tpu_custom_call.1} parent=1 // pred_region
      _
    $region17: #{tpu_custom_call.1} parent=1 // pred_fallthru
      _
    // Predicated region
    $region18: #{tpu_custom_call.1} parent=1 // pred_check
      _
    $region19: #{tpu_custom_call.1} parent=1 // pred_check_branch
      %24 = sbr.rel (0) target = $region21
    $region20: #{tpu_custom_call.1} parent=1 // pred_region
      _
    $region21: #{tpu_custom_call.1} parent=1 // pred_fallthru
      _
    // Predicated region
    $region22: #{tpu_custom_call.1} parent=1 // pred_check
      _
    $region23: #{tpu_custom_call.1} parent=1 // pred_check_branch
      %26 = sbr.rel (0) target = $region25
    $region24: #{tpu_custom_call.1} parent=1 // pred_region
      _
    $region25: #{tpu_custom_call.1} parent=1 // pred_fallthru
      _
    // Predicated region
    $region26: #{tpu_custom_call.1} parent=1 // pred_check
      _
    $region27: #{tpu_custom_call.1} parent=1 // pred_check_branch
      %28 = sbr.rel (0) target = $region29
    $region28: #{tpu_custom_call.1} parent=1 // pred_region
      _
    $region29: #{tpu_custom_call.1} parent=1 // pred_fallthru
      _
    %v29 = vld [vmem:[%s0] sm:$0x3]
    %v30 = vld [vmem:[%s1] sm:$0xff]
    %v31 = vld [vmem:[%s1 + $0x8] sm:$0xff]
    %v32 = vld [vmem:[%s1 + $0x10] sm:$0xff]
    %v33 = vld [vmem:[%s1 + $0x18] sm:$0xff]
    %v34 = vld [vmem:[%s1 + $0x20] sm:$0xff]
    %v35 = vld [vmem:[%s1 + $0x28] sm:$0xff]
    %v36 = vld [vmem:[%s1 + $0x30] sm:$0xff]
    %v37 = vld [vmem:[%s1 + $0x38] sm:$0xff]
    %39 = vset.pattern.permute.xlu0 0
    %40 = vperm.xlu0 %39, %v30
    %v41 = vpop.permute.xlu0 %40
    %44 = vset.pattern.permute.xlu0 0
    %45 = vperm.xlu0 %44, %v31
    %v46 = vpop.permute.xlu0 %45
    %49 = vset.pattern.permute.xlu0 0
    %50 = vperm.xlu0 %49, %v32
    %v51 = vpop.permute.xlu0 %50
    %54 = vset.pattern.permute.xlu0 0
    %55 = vperm.xlu0 %54, %v33
    %v56 = vpop.permute.xlu0 %55
    %59 = vset.pattern.permute.xlu0 0
    %60 = vperm.xlu0 %59, %v34
    %v61 = vpop.permute.xlu0 %60
    %64 = vset.pattern.permute.xlu0 0
    %65 = vperm.xlu0 %64, %v35
    %v66 = vpop.permute.xlu0 %65
    %69 = vset.pattern.permute.xlu0 0
    %70 = vperm.xlu0 %69, %v36
    %v71 = vpop.permute.xlu0 %70
    %74 = vset.pattern.permute.xlu0 0
    %75 = vperm.xlu0 %74, %v37
    %v76 = vpop.permute.xlu0 %75
    %v78 = vlaneseq
    %v79 = vshrl.u32 %v78, 7
    %v80 = vsub.s32 0, %v79
    %v81 = vrot.slane %v29, %v80
    %v82 = vmul.f32 %v41, %v81
    %v83 = vmul.f32 %v46, %v81
    %v84 = vmul.f32 %v51, %v81
    %v85 = vmul.f32 %v56, %v81
    %v86 = vmul.f32 %v61, %v81
    %v87 = vmul.f32 %v66, %v81
    %v88 = vmul.f32 %v71, %v81
    %v89 = vmul.f32 %v76, %v81
    %90 = vset.pattern.permute.xlu0 1
    %91 = vperm.xlu0 %90, %v30
    %v92 = vpop.permute.xlu0 %91
    %94 = vset.pattern.permute.xlu0 1
    %95 = vperm.xlu0 %94, %v31
    %v96 = vpop.permute.xlu0 %95
    %98 = vset.pattern.permute.xlu0 1
    %99 = vperm.xlu0 %98, %v32
    %v100 = vpop.permute.xlu0 %99
    %102 = vset.pattern.permute.xlu0 1
    %103 = vperm.xlu0 %102, %v33
    %v104 = vpop.permute.xlu0 %103
    %106 = vset.pattern.permute.xlu0 1
    %107 = vperm.xlu0 %106, %v34
    %v108 = vpop.permute.xlu0 %107
    %110 = vset.pattern.permute.xlu0 1
    %111 = vperm.xlu0 %110, %v35
    %v112 = vpop.permute.xlu0 %111
    %114 = vset.pattern.permute.xlu0 1
    %115 = vperm.xlu0 %114, %v36
    %v116 = vpop.permute.xlu0 %115
    %118 = vset.pattern.permute.xlu0 1
    %119 = vperm.xlu0 %118, %v37
    %v120 = vpop.permute.xlu0 %119
    %v122 = vlaneseq
    %v123 = vshrl.u32 %v122, 7
    %v124 = vsub.s32 1, %v123
    %v125 = vrot.slane %v29, %v124
    %v126 = vmul.f32 %v92, %v125
    %v127 = vmul.f32 %v96, %v125
    %v128 = vmul.f32 %v100, %v125
    %v129 = vmul.f32 %v104, %v125
    %v130 = vmul.f32 %v108, %v125
    %v131 = vmul.f32 %v112, %v125
    %v132 = vmul.f32 %v116, %v125
    %v133 = vmul.f32 %v120, %v125
    %v134 = vadd.f32 %v82, %v126
    %v135 = vadd.f32 %v83, %v127
    %v136 = vadd.f32 %v84, %v128
    %v137 = vadd.f32 %v85, %v129
    %v138 = vadd.f32 %v86, %v130
    %v139 = vadd.f32 %v87, %v131
    %v140 = vadd.f32 %v88, %v132
    %v141 = vadd.f32 %v89, %v133
    %v142 = vld [vmem:[%s2] sm:$0xff]
    %v143 = vld [vmem:[%s2 + $0x8] sm:$0xff]
    %v144 = vld [vmem:[%s2 + $0x10] sm:$0xff]
    %v145 = vld [vmem:[%s2 + $0x18] sm:$0xff]
    %v146 = vld [vmem:[%s2 + $0x20] sm:$0xff]
    %v147 = vld [vmem:[%s2 + $0x28] sm:$0xff]
    %v148 = vld [vmem:[%s2 + $0x30] sm:$0xff]
    %v149 = vld [vmem:[%s2 + $0x38] sm:$0xff]
    %151 = vset.pattern.permute.xlu0 0
    %152 = vperm.xlu0 %151, %v142
    %v153 = vpop.permute.xlu0 %152
    %156 = vset.pattern.permute.xlu0 0
    %157 = vperm.xlu0 %156, %v143
    %v158 = vpop.permute.xlu0 %157
    %161 = vset.pattern.permute.xlu0 0
    %162 = vperm.xlu0 %161, %v144
    %v163 = vpop.permute.xlu0 %162
    %166 = vset.pattern.permute.xlu0 0
    %167 = vperm.xlu0 %166, %v145
    %v168 = vpop.permute.xlu0 %167
    %171 = vset.pattern.permute.xlu0 0
    %172 = vperm.xlu0 %171, %v146
    %v173 = vpop.permute.xlu0 %172
    %176 = vset.pattern.permute.xlu0 0
    %177 = vperm.xlu0 %176, %v147
    %v178 = vpop.permute.xlu0 %177
    %181 = vset.pattern.permute.xlu0 0
    %182 = vperm.xlu0 %181, %v148
    %v183 = vpop.permute.xlu0 %182
    %186 = vset.pattern.permute.xlu0 0
    %187 = vperm.xlu0 %186, %v149
    %v188 = vpop.permute.xlu0 %187
    %v190 = vadd.f32 %v134, %v153
    %v191 = vadd.f32 %v135, %v158
    %v192 = vadd.f32 %v136, %v163
    %v193 = vadd.f32 %v137, %v168
    %v194 = vadd.f32 %v138, %v173
    %v195 = vadd.f32 %v139, %v178
    %v196 = vadd.f32 %v140, %v183
    %v197 = vadd.f32 %v141, %v188
    %v198 = vmul.f32 %v190, 0.5
    %v199 = vmul.f32 %v191, 0.5
    %v200 = vmul.f32 %v192, 0.5
    %v201 = vmul.f32 %v193, 0.5
    %v202 = vmul.f32 %v194, 0.5
    %v203 = vmul.f32 %v195, 0.5
    %v204 = vmul.f32 %v196, 0.5
    %v205 = vmul.f32 %v197, 0.5
    %v206 = vtanh.pop %v198
    %v207 = vtanh.pop %v199
    %v208 = vtanh.pop %v200
    %v209 = vtanh.pop %v201
    %v210 = vtanh.pop %v202
    %v211 = vtanh.pop %v203
    %v212 = vtanh.pop %v204
    %v213 = vtanh.pop %v205
    %v214 = vadd.f32 %v206, 1.0
    %v215 = vadd.f32 %v207, 1.0
    %v216 = vadd.f32 %v208, 1.0
    %v217 = vadd.f32 %v209, 1.0
    %v218 = vadd.f32 %v210, 1.0
    %v219 = vadd.f32 %v211, 1.0
    %v220 = vadd.f32 %v212, 1.0
    %v221 = vadd.f32 %v213, 1.0
    %v222 = vmul.f32 %v198, %v214
    %v223 = vmul.f32 %v199, %v215
    %v224 = vmul.f32 %v200, %v216
    %v225 = vmul.f32 %v201, %v217
    %v226 = vmul.f32 %v202, %v218
    %v227 = vmul.f32 %v203, %v219
    %v228 = vmul.f32 %v204, %v220
    %v229 = vmul.f32 %v205, %v221
    %v230 = vld [vmem:[%s3] sm:$0xff]
    %v231 = vld [vmem:[%s3 + $0x8] sm:$0xff]
    %v232 = vld [vmem:[%s3 + $0x10] sm:$0xff]
    %v233 = vld [vmem:[%s3 + $0x18] sm:$0xff]
    %v234 = vld [vmem:[%s3 + $0x20] sm:$0xff]
    %v235 = vld [vmem:[%s3 + $0x28] sm:$0xff]
    %v236 = vld [vmem:[%s3 + $0x30] sm:$0xff]
    %v237 = vld [vmem:[%s3 + $0x38] sm:$0xff]
    %v238 = vld [vmem:[%s4] sm:$0xff]
    %v239 = vld [vmem:[%s4 + $0x8] sm:$0xff]
    %v240 = vld [vmem:[%s4 + $0x10] sm:$0xff]
    %v241 = vld [vmem:[%s4 + $0x18] sm:$0xff]
    %v242 = vld [vmem:[%s4 + $0x20] sm:$0xff]
    %v243 = vld [vmem:[%s4 + $0x28] sm:$0xff]
    %v244 = vld [vmem:[%s4 + $0x30] sm:$0xff]
    %v245 = vld [vmem:[%s4 + $0x38] sm:$0xff]
    %247 = vset.pattern.permute.xlu0 0
    %248 = vperm.xlu0 %247, %v238
    %v249 = vpop.permute.xlu0 %248
    %252 = vset.pattern.permute.xlu0 0
    %253 = vperm.xlu0 %252, %v239
    %v254 = vpop.permute.xlu0 %253
    %257 = vset.pattern.permute.xlu0 0
    %258 = vperm.xlu0 %257, %v240
    %v259 = vpop.permute.xlu0 %258
    %262 = vset.pattern.permute.xlu0 0
    %263 = vperm.xlu0 %262, %v241
    %v264 = vpop.permute.xlu0 %263
    %267 = vset.pattern.permute.xlu0 0
    %268 = vperm.xlu0 %267, %v242
    %v269 = vpop.permute.xlu0 %268
    %272 = vset.pattern.permute.xlu0 0
    %273 = vperm.xlu0 %272, %v243
    %v274 = vpop.permute.xlu0 %273
    %277 = vset.pattern.permute.xlu0 0
    %278 = vperm.xlu0 %277, %v244
    %v279 = vpop.permute.xlu0 %278
    %282 = vset.pattern.permute.xlu0 0
    %283 = vperm.xlu0 %282, %v245
    %v284 = vpop.permute.xlu0 %283
    %vm286 = vcmask 523264
    %v288 = vsel %vm286, %v230, 0
    %v291 = vsel %vm286, %v231, 0
    %v294 = vsel %vm286, %v232, 0
    %v297 = vsel %vm286, %v233, 0
    %v300 = vsel %vm286, %v234, 0
    %v303 = vsel %vm286, %v235, 0
    %v306 = vsel %vm286, %v236, 0
    %v309 = vsel %vm286, %v237, 0
    %311 = vmatprep.subr.mxu0 0.0
    %312 = vmatpush1.msra.mxu0 0.0
    %313 = vmatprep.subr.mxu0 0.0
    %314 = vmatpush1.msra.mxu0 0.0
    %315 = vmatprep.subr.mxu0 0.0
    %316 = vmatpush1.msra.mxu0 0.0
    %317 = vmatprep.subr.mxu0 0.0
    %318 = vmatpush1.msra.mxu0 0.0
    %319 = vmatprep.subr.mxu0 0.0
    %320 = vmatpush1.msra.mxu0 0.0
    %321 = vmatprep.subr.mxu0 0.0
    %322 = vmatpush1.msra.mxu0 0.0
    %323 = vmatprep.subr.mxu0 0.0
    %324 = vmatpush1.msra.mxu0 0.0
    %325 = vmatprep.subr.mxu0 0.0
    %326 = vmatpush1.msra.mxu0 0.0
    %327 = vmatprep.subr.mxu0 0.0
    %328 = vmatpush1.msra.mxu0 %v229
    %329 = vmatprep.subr.mxu0 0.0
    %330 = vmatpush1.msra.mxu0 %v228
    %331 = vmatprep.subr.mxu0 0.0
    %332 = vmatpush1.msra.mxu0 %v227
    %333 = vmatprep.subr.mxu0 0.0
    %334 = vmatpush1.msra.mxu0 %v226
    %335 = vmatprep.subr.mxu0 0.0
    %336 = vmatpush1.msra.mxu0 %v225
    %337 = vmatprep.subr.mxu0 0.0
    %338 = vmatpush1.msra.mxu0 %v224
    %339 = vmatprep.subr.mxu0 0.0
    %340 = vmatpush1.msra.mxu0 %v223
    %341 = vmatprep.subr.mxu0 0.0
    %342 = vmatpush1.msra.mxu0 %v222
    %343 = vmatprep.subr.mxu0 0.0
    %344 = vmatpush2.msra.mxu0 0.0
    %345 = vmatprep.subr.mxu0 0.0
    %346 = vmatpush2.msra.mxu0 0.0
    %347 = vmatprep.subr.mxu0 0.0
    %348 = vmatpush2.msra.mxu0 0.0
    %349 = vmatprep.subr.mxu0 0.0
    %350 = vmatpush2.msra.mxu0 0.0
    %351 = vmatprep.subr.mxu0 0.0
    %352 = vmatpush2.msra.mxu0 0.0
    %353 = vmatprep.subr.mxu0 0.0
    %354 = vmatpush2.msra.mxu0 0.0
    %355 = vmatprep.subr.mxu0 0.0
    %356 = vmatpush2.msra.mxu0 0.0
    %357 = vmatprep.subr.mxu0 0.0
    %358 = vmatpush2.msra.mxu0 0.0
    %359 = vmatprep.subr.mxu0 0.0
    %360 = vmatpush2.msra.mxu0 0.0
    %361 = vmatprep.subr.mxu0 0.0
    %362 = vmatpush2.msra.mxu0 0.0
    %363 = vmatprep.subr.mxu0 0.0
    %364 = vmatpush2.msra.mxu0 0.0
    %365 = vmatprep.subr.mxu0 0.0
    %366 = vmatpush2.msra.mxu0 0.0
    %367 = vmatprep.subr.mxu0 0.0
    %368 = vmatpush2.msra.mxu0 0.0
    %369 = vmatprep.subr.mxu0 0.0
    %370 = vmatpush2.msra.mxu0 0.0
    %371 = vmatprep.subr.mxu0 0.0
    %372 = vmatpush2.msra.mxu0 0.0
    %373 = vmatprep.subr.mxu0 0.0
    %374 = vmatpush2.msra.mxu0 0.0
    %375 = vmatprep.mubr.f32.mxu0 0.0
    %376 = vmatmul.mubr.f32.gmra.mxu0 %v288
    %v377 = vpop.f32.mrf.mxu0
    %v378 = vadd.f32 %v249, %v377
    %v379 = vpop.f32.mrf.mxu0
    %380 = vmatprep.mubr.f32.mxu0 0.0
    %381 = vmatmul.mubr.f32.gmra.mxu0 %v291
    %v382 = vpop.f32.mrf.mxu0
    %v383 = vadd.f32 %v254, %v382
    %v384 = vpop.f32.mrf.mxu0
    %385 = vmatprep.mubr.f32.mxu0 0.0
    %386 = vmatmul.mubr.f32.gmra.mxu0 %v294
    %v387 = vpop.f32.mrf.mxu0
    %v388 = vadd.f32 %v259, %v387
    %v389 = vpop.f32.mrf.mxu0
    %390 = vmatprep.mubr.f32.mxu0 0.0
    %391 = vmatmul.mubr.f32.gmra.mxu0 %v297
    %v392 = vpop.f32.mrf.mxu0
    %v393 = vadd.f32 %v264, %v392
    %v394 = vpop.f32.mrf.mxu0
    %395 = vmatprep.mubr.f32.mxu0 0.0
    %396 = vmatmul.mubr.f32.gmra.mxu0 %v300
    %v397 = vpop.f32.mrf.mxu0
    %v398 = vadd.f32 %v269, %v397
    %v399 = vpop.f32.mrf.mxu0
    %400 = vmatprep.mubr.f32.mxu0 0.0
    %401 = vmatmul.mubr.f32.gmra.mxu0 %v303
    %v402 = vpop.f32.mrf.mxu0
    %v403 = vadd.f32 %v274, %v402
    %v404 = vpop.f32.mrf.mxu0
    %405 = vmatprep.mubr.f32.mxu0 0.0
    %406 = vmatmul.mubr.f32.gmra.mxu0 %v306
    %v407 = vpop.f32.mrf.mxu0
    %v408 = vadd.f32 %v279, %v407
    %v409 = vpop.f32.mrf.mxu0
    %410 = vmatprep.mubr.f32.mxu0 0.0
    %411 = vmatmul.mubr.f32.gmra.mxu0 %v309
    %v412 = vpop.f32.mrf.mxu0
    %v413 = vadd.f32 %v284, %v412
    %v414 = vpop.f32.mrf.mxu0
    %415 = vdwg.mxu0
    %v416 = vmul.f32 %v378, 0.5
    %v417 = vmul.f32 %v383, 0.5
    %v418 = vmul.f32 %v388, 0.5
    %v419 = vmul.f32 %v393, 0.5
    %v420 = vmul.f32 %v398, 0.5
    %v421 = vmul.f32 %v403, 0.5
    %v422 = vmul.f32 %v408, 0.5
    %v423 = vmul.f32 %v413, 0.5
    %v424 = vtanh.pop %v416
    %v425 = vtanh.pop %v417
    %v426 = vtanh.pop %v418
    %v427 = vtanh.pop %v419
    %v428 = vtanh.pop %v420
    %v429 = vtanh.pop %v421
    %v430 = vtanh.pop %v422
    %v431 = vtanh.pop %v423
    %v432 = vadd.f32 %v424, 1.0
    %v433 = vadd.f32 %v425, 1.0
    %v434 = vadd.f32 %v426, 1.0
    %v435 = vadd.f32 %v427, 1.0
    %v436 = vadd.f32 %v428, 1.0
    %v437 = vadd.f32 %v429, 1.0
    %v438 = vadd.f32 %v430, 1.0
    %v439 = vadd.f32 %v431, 1.0
    %v440 = vmul.f32 %v416, %v432
    %v441 = vmul.f32 %v417, %v433
    %v442 = vmul.f32 %v418, %v434
    %v443 = vmul.f32 %v419, %v435
    %v444 = vmul.f32 %v420, %v436
    %v445 = vmul.f32 %v421, %v437
    %v446 = vmul.f32 %v422, %v438
    %v447 = vmul.f32 %v423, %v439
    %s448 = scalar_lea.vmem %s3, 64
    %v449 = vld [vmem:[%s448] sm:$0xff]
    %v450 = vld [vmem:[%s448 + $0x8] sm:$0xff]
    %v451 = vld [vmem:[%s448 + $0x10] sm:$0xff]
    %v452 = vld [vmem:[%s448 + $0x18] sm:$0xff]
    %v453 = vld [vmem:[%s448 + $0x20] sm:$0xff]
    %v454 = vld [vmem:[%s448 + $0x28] sm:$0xff]
    %v455 = vld [vmem:[%s448 + $0x30] sm:$0xff]
    %v456 = vld [vmem:[%s448 + $0x38] sm:$0xff]
    %s457 = scalar_lea.vmem %s4, 64
    %v458 = vld [vmem:[%s457] sm:$0xff]
    %v459 = vld [vmem:[%s457 + $0x8] sm:$0xff]
    %v460 = vld [vmem:[%s457 + $0x10] sm:$0xff]
    %v461 = vld [vmem:[%s457 + $0x18] sm:$0xff]
    %v462 = vld [vmem:[%s457 + $0x20] sm:$0xff]
    %v463 = vld [vmem:[%s457 + $0x28] sm:$0xff]
    %v464 = vld [vmem:[%s457 + $0x30] sm:$0xff]
    %v465 = vld [vmem:[%s457 + $0x38] sm:$0xff]
    %467 = vset.pattern.permute.xlu0 0
    %468 = vperm.xlu0 %467, %v458
    %v469 = vpop.permute.xlu0 %468
    %472 = vset.pattern.permute.xlu0 0
    %473 = vperm.xlu0 %472, %v459
    %v474 = vpop.permute.xlu0 %473
    %477 = vset.pattern.permute.xlu0 0
    %478 = vperm.xlu0 %477, %v460
    %v479 = vpop.permute.xlu0 %478
    %482 = vset.pattern.permute.xlu0 0
    %483 = vperm.xlu0 %482, %v461
    %v484 = vpop.permute.xlu0 %483
    %487 = vset.pattern.permute.xlu0 0
    %488 = vperm.xlu0 %487, %v462
    %v489 = vpop.permute.xlu0 %488
    %492 = vset.pattern.permute.xlu0 0
    %493 = vperm.xlu0 %492, %v463
    %v494 = vpop.permute.xlu0 %493
    %497 = vset.pattern.permute.xlu0 0
    %498 = vperm.xlu0 %497, %v464
    %v499 = vpop.permute.xlu0 %498
    %502 = vset.pattern.permute.xlu0 0
    %503 = vperm.xlu0 %502, %v465
    %v504 = vpop.permute.xlu0 %503
    %v507 = vsel %vm286, %v449, 0
    %v510 = vsel %vm286, %v450, 0
    %v513 = vsel %vm286, %v451, 0
    %v516 = vsel %vm286, %v452, 0
    %v519 = vsel %vm286, %v453, 0
    %v522 = vsel %vm286, %v454, 0
    %v525 = vsel %vm286, %v455, 0
    %v528 = vsel %vm286, %v456, 0
    %530 = vmatprep.subr.mxu0 0.0
    %531 = vmatpush1.msra.mxu0 0.0
    %532 = vmatprep.subr.mxu0 0.0
    %533 = vmatpush1.msra.mxu0 0.0
    %534 = vmatprep.subr.mxu0 0.0
    %535 = vmatpush1.msra.mxu0 0.0
    %536 = vmatprep.subr.mxu0 0.0
    %537 = vmatpush1.msra.mxu0 0.0
    %538 = vmatprep.subr.mxu0 0.0
    %539 = vmatpush1.msra.mxu0 0.0
    %540 = vmatprep.subr.mxu0 0.0
    %541 = vmatpush1.msra.mxu0 0.0
    %542 = vmatprep.subr.mxu0 0.0
    %543 = vmatpush1.msra.mxu0 0.0
    %544 = vmatprep.subr.mxu0 0.0
    %545 = vmatpush1.msra.mxu0 0.0
    %546 = vmatprep.subr.mxu0 0.0
    %547 = vmatpush1.msra.mxu0 %v447
    %548 = vmatprep.subr.mxu0 0.0
    %549 = vmatpush1.msra.mxu0 %v446
    %550 = vmatprep.subr.mxu0 0.0
    %551 = vmatpush1.msra.mxu0 %v445
    %552 = vmatprep.subr.mxu0 0.0
    %553 = vmatpush1.msra.mxu0 %v444
    %554 = vmatprep.subr.mxu0 0.0
    %555 = vmatpush1.msra.mxu0 %v443
    %556 = vmatprep.subr.mxu0 0.0
    %557 = vmatpush1.msra.mxu0 %v442
    %558 = vmatprep.subr.mxu0 0.0
    %559 = vmatpush1.msra.mxu0 %v441
    %560 = vmatprep.subr.mxu0 0.0
    %561 = vmatpush1.msra.mxu0 %v440
    %562 = vmatprep.subr.mxu0 0.0
    %563 = vmatpush2.msra.mxu0 0.0
    %564 = vmatprep.subr.mxu0 0.0
    %565 = vmatpush2.msra.mxu0 0.0
    %566 = vmatprep.subr.mxu0 0.0
    %567 = vmatpush2.msra.mxu0 0.0
    %568 = vmatprep.subr.mxu0 0.0
    %569 = vmatpush2.msra.mxu0 0.0
    %570 = vmatprep.subr.mxu0 0.0
    %571 = vmatpush2.msra.mxu0 0.0
    %572 = vmatprep.subr.mxu0 0.0
    %573 = vmatpush2.msra.mxu0 0.0
    %574 = vmatprep.subr.mxu0 0.0
    %575 = vmatpush2.msra.mxu0 0.0
    %576 = vmatprep.subr.mxu0 0.0
    %577 = vmatpush2.msra.mxu0 0.0
    %578 = vmatprep.subr.mxu0 0.0
    %579 = vmatpush2.msra.mxu0 0.0
    %580 = vmatprep.subr.mxu0 0.0
    %581 = vmatpush2.msra.mxu0 0.0
    %582 = vmatprep.subr.mxu0 0.0
    %583 = vmatpush2.msra.mxu0 0.0
    %584 = vmatprep.subr.mxu0 0.0
    %585 = vmatpush2.msra.mxu0 0.0
    %586 = vmatprep.subr.mxu0 0.0
    %587 = vmatpush2.msra.mxu0 0.0
    %588 = vmatprep.subr.mxu0 0.0
    %589 = vmatpush2.msra.mxu0 0.0
    %590 = vmatprep.subr.mxu0 0.0
    %591 = vmatpush2.msra.mxu0 0.0
    %592 = vmatprep.subr.mxu0 0.0
    %593 = vmatpush2.msra.mxu0 0.0
    %594 = vmatprep.mubr.f32.mxu0 0.0
    %595 = vmatmul.mubr.f32.gmra.mxu0 %v507
    %v596 = vpop.f32.mrf.mxu0
    %v597 = vadd.f32 %v469, %v596
    %v598 = vpop.f32.mrf.mxu0
    %599 = vmatprep.mubr.f32.mxu0 0.0
    %600 = vmatmul.mubr.f32.gmra.mxu0 %v510
    %v601 = vpop.f32.mrf.mxu0
    %v602 = vadd.f32 %v474, %v601
    %v603 = vpop.f32.mrf.mxu0
    %604 = vmatprep.mubr.f32.mxu0 0.0
    %605 = vmatmul.mubr.f32.gmra.mxu0 %v513
    %v606 = vpop.f32.mrf.mxu0
    %v607 = vadd.f32 %v479, %v606
    %v608 = vpop.f32.mrf.mxu0
    %609 = vmatprep.mubr.f32.mxu0 0.0
    %610 = vmatmul.mubr.f32.gmra.mxu0 %v516
    %v611 = vpop.f32.mrf.mxu0
    %v612 = vadd.f32 %v484, %v611
    %v613 = vpop.f32.mrf.mxu0
    %614 = vmatprep.mubr.f32.mxu0 0.0
    %615 = vmatmul.mubr.f32.gmra.mxu0 %v519
    %v616 = vpop.f32.mrf.mxu0
    %v617 = vadd.f32 %v489, %v616
    %v618 = vpop.f32.mrf.mxu0
    %619 = vmatprep.mubr.f32.mxu0 0.0
    %620 = vmatmul.mubr.f32.gmra.mxu0 %v522
    %v621 = vpop.f32.mrf.mxu0
    %v622 = vadd.f32 %v494, %v621
    %v623 = vpop.f32.mrf.mxu0
    %624 = vmatprep.mubr.f32.mxu0 0.0
    %625 = vmatmul.mubr.f32.gmra.mxu0 %v525
    %v626 = vpop.f32.mrf.mxu0
    %v627 = vadd.f32 %v499, %v626
    %v628 = vpop.f32.mrf.mxu0
    %629 = vmatprep.mubr.f32.mxu0 0.0
    %630 = vmatmul.mubr.f32.gmra.mxu0 %v528
    %v631 = vpop.f32.mrf.mxu0
    %v632 = vadd.f32 %v504, %v631
    %v633 = vpop.f32.mrf.mxu0
    %634 = vdwg.mxu0
    %v635 = vmul.f32 %v597, 0.5
    %v636 = vmul.f32 %v602, 0.5
    %v637 = vmul.f32 %v607, 0.5
    %v638 = vmul.f32 %v612, 0.5
    %v639 = vmul.f32 %v617, 0.5
    %v640 = vmul.f32 %v622, 0.5
    %v641 = vmul.f32 %v627, 0.5
    %v642 = vmul.f32 %v632, 0.5
    %v643 = vtanh.pop %v635
    %v644 = vtanh.pop %v636
    %v645 = vtanh.pop %v637
    %v646 = vtanh.pop %v638
    %v647 = vtanh.pop %v639
    %v648 = vtanh.pop %v640
    %v649 = vtanh.pop %v641
    %v650 = vtanh.pop %v642
    %v651 = vadd.f32 %v643, 1.0
    %v652 = vadd.f32 %v644, 1.0
    %v653 = vadd.f32 %v645, 1.0
    %v654 = vadd.f32 %v646, 1.0
    %v655 = vadd.f32 %v647, 1.0
    %v656 = vadd.f32 %v648, 1.0
    %v657 = vadd.f32 %v649, 1.0
    %v658 = vadd.f32 %v650, 1.0
    %v659 = vmul.f32 %v635, %v651
    %v660 = vmul.f32 %v636, %v652
    %v661 = vmul.f32 %v637, %v653
    %v662 = vmul.f32 %v638, %v654
    %v663 = vmul.f32 %v639, %v655
    %v664 = vmul.f32 %v640, %v656
    %v665 = vmul.f32 %v641, %v657
    %v666 = vmul.f32 %v642, %v658
    %s667 = scalar_lea.vmem %s3, 128
    %v668 = vld [vmem:[%s667] sm:$0xff]
    %v669 = vld [vmem:[%s667 + $0x8] sm:$0xff]
    %v670 = vld [vmem:[%s667 + $0x10] sm:$0xff]
    %v671 = vld [vmem:[%s667 + $0x18] sm:$0xff]
    %v672 = vld [vmem:[%s667 + $0x20] sm:$0xff]
    %v673 = vld [vmem:[%s667 + $0x28] sm:$0xff]
    %v674 = vld [vmem:[%s667 + $0x30] sm:$0xff]
    %v675 = vld [vmem:[%s667 + $0x38] sm:$0xff]
    %s676 = scalar_lea.vmem %s4, 128
    %v677 = vld [vmem:[%s676] sm:$0xff]
    %v678 = vld [vmem:[%s676 + $0x8] sm:$0xff]
    %v679 = vld [vmem:[%s676 + $0x10] sm:$0xff]
    %v680 = vld [vmem:[%s676 + $0x18] sm:$0xff]
    %v681 = vld [vmem:[%s676 + $0x20] sm:$0xff]
    %v682 = vld [vmem:[%s676 + $0x28] sm:$0xff]
    %v683 = vld [vmem:[%s676 + $0x30] sm:$0xff]
    %v684 = vld [vmem:[%s676 + $0x38] sm:$0xff]
    %686 = vset.pattern.permute.xlu0 0
    %687 = vperm.xlu0 %686, %v677
    %v688 = vpop.permute.xlu0 %687
    %691 = vset.pattern.permute.xlu0 0
    %692 = vperm.xlu0 %691, %v678
    %v693 = vpop.permute.xlu0 %692
    %696 = vset.pattern.permute.xlu0 0
    %697 = vperm.xlu0 %696, %v679
    %v698 = vpop.permute.xlu0 %697
    %701 = vset.pattern.permute.xlu0 0
    %702 = vperm.xlu0 %701, %v680
    %v703 = vpop.permute.xlu0 %702
    %706 = vset.pattern.permute.xlu0 0
    %707 = vperm.xlu0 %706, %v681
    %v708 = vpop.permute.xlu0 %707
    %711 = vset.pattern.permute.xlu0 0
    %712 = vperm.xlu0 %711, %v682
    %v713 = vpop.permute.xlu0 %712
    %716 = vset.pattern.permute.xlu0 0
    %717 = vperm.xlu0 %716, %v683
    %v718 = vpop.permute.xlu0 %717
    %721 = vset.pattern.permute.xlu0 0
    %722 = vperm.xlu0 %721, %v684
    %v723 = vpop.permute.xlu0 %722
    %v726 = vsel %vm286, %v668, 0
    %v729 = vsel %vm286, %v669, 0
    %v732 = vsel %vm286, %v670, 0
    %v735 = vsel %vm286, %v671, 0
    %v738 = vsel %vm286, %v672, 0
    %v741 = vsel %vm286, %v673, 0
    %v744 = vsel %vm286, %v674, 0
    %v747 = vsel %vm286, %v675, 0
    %749 = vmatprep.subr.mxu0 0.0
    %750 = vmatpush1.msra.mxu0 0.0
    %751 = vmatprep.subr.mxu0 0.0
    %752 = vmatpush1.msra.mxu0 0.0
    %753 = vmatprep.subr.mxu0 0.0
    %754 = vmatpush1.msra.mxu0 0.0
    %755 = vmatprep.subr.mxu0 0.0
    %756 = vmatpush1.msra.mxu0 0.0
    %757 = vmatprep.subr.mxu0 0.0
    %758 = vmatpush1.msra.mxu0 0.0
    %759 = vmatprep.subr.mxu0 0.0
    %760 = vmatpush1.msra.mxu0 0.0
    %761 = vmatprep.subr.mxu0 0.0
    %762 = vmatpush1.msra.mxu0 0.0
    %763 = vmatprep.subr.mxu0 0.0
    %764 = vmatpush1.msra.mxu0 0.0
    %765 = vmatprep.subr.mxu0 0.0
    %766 = vmatpush1.msra.mxu0 %v666
    %767 = vmatprep.subr.mxu0 0.0
    %768 = vmatpush1.msra.mxu0 %v665
    %769 = vmatprep.subr.mxu0 0.0
    %770 = vmatpush1.msra.mxu0 %v664
    %771 = vmatprep.subr.mxu0 0.0
    %772 = vmatpush1.msra.mxu0 %v663
    %773 = vmatprep.subr.mxu0 0.0
    %774 = vmatpush1.msra.mxu0 %v662
    %775 = vmatprep.subr.mxu0 0.0
    %776 = vmatpush1.msra.mxu0 %v661
    %777 = vmatprep.subr.mxu0 0.0
    %778 = vmatpush1.msra.mxu0 %v660
    %779 = vmatprep.subr.mxu0 0.0
    %780 = vmatpush1.msra.mxu0 %v659
    %781 = vmatprep.subr.mxu0 0.0
    %782 = vmatpush2.msra.mxu0 0.0
    %783 = vmatprep.subr.mxu0 0.0
    %784 = vmatpush2.msra.mxu0 0.0
    %785 = vmatprep.subr.mxu0 0.0
    %786 = vmatpush2.msra.mxu0 0.0
    %787 = vmatprep.subr.mxu0 0.0
    %788 = vmatpush2.msra.mxu0 0.0
    %789 = vmatprep.subr.mxu0 0.0
    %790 = vmatpush2.msra.mxu0 0.0
    %791 = vmatprep.subr.mxu0 0.0
    %792 = vmatpush2.msra.mxu0 0.0
    %793 = vmatprep.subr.mxu0 0.0
    %794 = vmatpush2.msra.mxu0 0.0
    %795 = vmatprep.subr.mxu0 0.0
    %796 = vmatpush2.msra.mxu0 0.0
    %797 = vmatprep.subr.mxu0 0.0
    %798 = vmatpush2.msra.mxu0 0.0
    %799 = vmatprep.subr.mxu0 0.0
    %800 = vmatpush2.msra.mxu0 0.0
    %801 = vmatprep.subr.mxu0 0.0
    %802 = vmatpush2.msra.mxu0 0.0
    %803 = vmatprep.subr.mxu0 0.0
    %804 = vmatpush2.msra.mxu0 0.0
    %805 = vmatprep.subr.mxu0 0.0
    %806 = vmatpush2.msra.mxu0 0.0
    %807 = vmatprep.subr.mxu0 0.0
    %808 = vmatpush2.msra.mxu0 0.0
    %809 = vmatprep.subr.mxu0 0.0
    %810 = vmatpush2.msra.mxu0 0.0
    %811 = vmatprep.subr.mxu0 0.0
    %812 = vmatpush2.msra.mxu0 0.0
    %813 = vmatprep.mubr.f32.mxu0 0.0
    %814 = vmatmul.mubr.f32.gmra.mxu0 %v726
    %v815 = vpop.f32.mrf.mxu0
    %v816 = vadd.f32 %v688, %v815
    %v817 = vpop.f32.mrf.mxu0
    %818 = vmatprep.mubr.f32.mxu0 0.0
    %819 = vmatmul.mubr.f32.gmra.mxu0 %v729
    %v820 = vpop.f32.mrf.mxu0
    %v821 = vadd.f32 %v693, %v820
    %v822 = vpop.f32.mrf.mxu0
    %823 = vmatprep.mubr.f32.mxu0 0.0
    %824 = vmatmul.mubr.f32.gmra.mxu0 %v732
    %v825 = vpop.f32.mrf.mxu0
    %v826 = vadd.f32 %v698, %v825
    %v827 = vpop.f32.mrf.mxu0
    %828 = vmatprep.mubr.f32.mxu0 0.0
    %829 = vmatmul.mubr.f32.gmra.mxu0 %v735
    %v830 = vpop.f32.mrf.mxu0
    %v831 = vadd.f32 %v703, %v830
    %v832 = vpop.f32.mrf.mxu0
    %833 = vmatprep.mubr.f32.mxu0 0.0
    %834 = vmatmul.mubr.f32.gmra.mxu0 %v738
    %v835 = vpop.f32.mrf.mxu0
    %v836 = vadd.f32 %v708, %v835
    %v837 = vpop.f32.mrf.mxu0
    %838 = vmatprep.mubr.f32.mxu0 0.0
    %839 = vmatmul.mubr.f32.gmra.mxu0 %v741
    %v840 = vpop.f32.mrf.mxu0
    %v841 = vadd.f32 %v713, %v840
    %v842 = vpop.f32.mrf.mxu0
    %843 = vmatprep.mubr.f32.mxu0 0.0
    %844 = vmatmul.mubr.f32.gmra.mxu0 %v744
    %v845 = vpop.f32.mrf.mxu0
    %v846 = vadd.f32 %v718, %v845
    %v847 = vpop.f32.mrf.mxu0
    %848 = vmatprep.mubr.f32.mxu0 0.0
    %849 = vmatmul.mubr.f32.gmra.mxu0 %v747
    %v850 = vpop.f32.mrf.mxu0
    %v851 = vadd.f32 %v723, %v850
    %v852 = vpop.f32.mrf.mxu0
    %853 = vdwg.mxu0
    %v854 = vmul.f32 %v816, 0.5
    %v855 = vmul.f32 %v821, 0.5
    %v856 = vmul.f32 %v826, 0.5
    %v857 = vmul.f32 %v831, 0.5
    %v858 = vmul.f32 %v836, 0.5
    %v859 = vmul.f32 %v841, 0.5
    %v860 = vmul.f32 %v846, 0.5
    %v861 = vmul.f32 %v851, 0.5
    %v862 = vtanh.pop %v854
    %v863 = vtanh.pop %v855
    %v864 = vtanh.pop %v856
    %v865 = vtanh.pop %v857
    %v866 = vtanh.pop %v858
    %v867 = vtanh.pop %v859
    %v868 = vtanh.pop %v860
    %v869 = vtanh.pop %v861
    %v870 = vadd.f32 %v862, 1.0
    %v871 = vadd.f32 %v863, 1.0
    %v872 = vadd.f32 %v864, 1.0
    %v873 = vadd.f32 %v865, 1.0
    %v874 = vadd.f32 %v866, 1.0
    %v875 = vadd.f32 %v867, 1.0
    %v876 = vadd.f32 %v868, 1.0
    %v877 = vadd.f32 %v869, 1.0
    %v878 = vmul.f32 %v854, %v870
    %v879 = vmul.f32 %v855, %v871
    %v880 = vmul.f32 %v856, %v872
    %v881 = vmul.f32 %v857, %v873
    %v882 = vmul.f32 %v858, %v874
    %v883 = vmul.f32 %v859, %v875
    %v884 = vmul.f32 %v860, %v876
    %v885 = vmul.f32 %v861, %v877
    %s886 = scalar_lea.vmem %s3, 192
    %v887 = vld [vmem:[%s886] sm:$0xff]
    %v888 = vld [vmem:[%s886 + $0x8] sm:$0xff]
    %v889 = vld [vmem:[%s886 + $0x10] sm:$0xff]
    %v890 = vld [vmem:[%s886 + $0x18] sm:$0xff]
    %v891 = vld [vmem:[%s886 + $0x20] sm:$0xff]
    %v892 = vld [vmem:[%s886 + $0x28] sm:$0xff]
    %v893 = vld [vmem:[%s886 + $0x30] sm:$0xff]
    %v894 = vld [vmem:[%s886 + $0x38] sm:$0xff]
    %s895 = scalar_lea.vmem %s4, 192
    %v896 = vld [vmem:[%s895] sm:$0xff]
    %v897 = vld [vmem:[%s895 + $0x8] sm:$0xff]
    %v898 = vld [vmem:[%s895 + $0x10] sm:$0xff]
    %v899 = vld [vmem:[%s895 + $0x18] sm:$0xff]
    %v900 = vld [vmem:[%s895 + $0x20] sm:$0xff]
    %v901 = vld [vmem:[%s895 + $0x28] sm:$0xff]
    %v902 = vld [vmem:[%s895 + $0x30] sm:$0xff]
    %v903 = vld [vmem:[%s895 + $0x38] sm:$0xff]
    %905 = vset.pattern.permute.xlu0 0
    %906 = vperm.xlu0 %905, %v896
    %v907 = vpop.permute.xlu0 %906
    %910 = vset.pattern.permute.xlu0 0
    %911 = vperm.xlu0 %910, %v897
    %v912 = vpop.permute.xlu0 %911
    %915 = vset.pattern.permute.xlu0 0
    %916 = vperm.xlu0 %915, %v898
    %v917 = vpop.permute.xlu0 %916
    %920 = vset.pattern.permute.xlu0 0
    %921 = vperm.xlu0 %920, %v899
    %v922 = vpop.permute.xlu0 %921
    %925 = vset.pattern.permute.xlu0 0
    %926 = vperm.xlu0 %925, %v900
    %v927 = vpop.permute.xlu0 %926
    %930 = vset.pattern.permute.xlu0 0
    %931 = vperm.xlu0 %930, %v901
    %v932 = vpop.permute.xlu0 %931
    %935 = vset.pattern.permute.xlu0 0
    %936 = vperm.xlu0 %935, %v902
    %v937 = vpop.permute.xlu0 %936
    %940 = vset.pattern.permute.xlu0 0
    %941 = vperm.xlu0 %940, %v903
    %v942 = vpop.permute.xlu0 %941
    %v945 = vsel %vm286, %v887, 0
    %v948 = vsel %vm286, %v888, 0
    %v951 = vsel %vm286, %v889, 0
    %v954 = vsel %vm286, %v890, 0
    %v957 = vsel %vm286, %v891, 0
    %v960 = vsel %vm286, %v892, 0
    %v963 = vsel %vm286, %v893, 0
    %v966 = vsel %vm286, %v894, 0
    %968 = vmatprep.subr.mxu0 0.0
    %969 = vmatpush1.msra.mxu0 0.0
    %970 = vmatprep.subr.mxu0 0.0
    %971 = vmatpush1.msra.mxu0 0.0
    %972 = vmatprep.subr.mxu0 0.0
    %973 = vmatpush1.msra.mxu0 0.0
    %974 = vmatprep.subr.mxu0 0.0
    %975 = vmatpush1.msra.mxu0 0.0
    %976 = vmatprep.subr.mxu0 0.0
    %977 = vmatpush1.msra.mxu0 0.0
    %978 = vmatprep.subr.mxu0 0.0
    %979 = vmatpush1.msra.mxu0 0.0
    %980 = vmatprep.subr.mxu0 0.0
    %981 = vmatpush1.msra.mxu0 0.0
    %982 = vmatprep.subr.mxu0 0.0
    %983 = vmatpush1.msra.mxu0 0.0
    %984 = vmatprep.subr.mxu0 0.0
    %985 = vmatpush1.msra.mxu0 %v885
    %986 = vmatprep.subr.mxu0 0.0
    %987 = vmatpush1.msra.mxu0 %v884
    %988 = vmatprep.subr.mxu0 0.0
    %989 = vmatpush1.msra.mxu0 %v883
    %990 = vmatprep.subr.mxu0 0.0
    %991 = vmatpush1.msra.mxu0 %v882
    %992 = vmatprep.subr.mxu0 0.0
    %993 = vmatpush1.msra.mxu0 %v881
    %994 = vmatprep.subr.mxu0 0.0
    %995 = vmatpush1.msra.mxu0 %v880
    %996 = vmatprep.subr.mxu0 0.0
    %997 = vmatpush1.msra.mxu0 %v879
    %998 = vmatprep.subr.mxu0 0.0
    %999 = vmatpush1.msra.mxu0 %v878
    %1000 = vmatprep.subr.mxu0 0.0
    %1001 = vmatpush2.msra.mxu0 0.0
    %1002 = vmatprep.subr.mxu0 0.0
    %1003 = vmatpush2.msra.mxu0 0.0
    %1004 = vmatprep.subr.mxu0 0.0
    %1005 = vmatpush2.msra.mxu0 0.0
    %1006 = vmatprep.subr.mxu0 0.0
    %1007 = vmatpush2.msra.mxu0 0.0
    %1008 = vmatprep.subr.mxu0 0.0
    %1009 = vmatpush2.msra.mxu0 0.0
    %1010 = vmatprep.subr.mxu0 0.0
    %1011 = vmatpush2.msra.mxu0 0.0
    %1012 = vmatprep.subr.mxu0 0.0
    %1013 = vmatpush2.msra.mxu0 0.0
    %1014 = vmatprep.subr.mxu0 0.0
    %1015 = vmatpush2.msra.mxu0 0.0
    %1016 = vmatprep.subr.mxu0 0.0
    %1017 = vmatpush2.msra.mxu0 0.0
    %1018 = vmatprep.subr.mxu0 0.0
    %1019 = vmatpush2.msra.mxu0 0.0
    %1020 = vmatprep.subr.mxu0 0.0
    %1021 = vmatpush2.msra.mxu0 0.0
    %1022 = vmatprep.subr.mxu0 0.0
    %1023 = vmatpush2.msra.mxu0 0.0
    %1024 = vmatprep.subr.mxu0 0.0
    %1025 = vmatpush2.msra.mxu0 0.0
    %1026 = vmatprep.subr.mxu0 0.0
    %1027 = vmatpush2.msra.mxu0 0.0
    %1028 = vmatprep.subr.mxu0 0.0
    %1029 = vmatpush2.msra.mxu0 0.0
    %1030 = vmatprep.subr.mxu0 0.0
    %1031 = vmatpush2.msra.mxu0 0.0
    %1032 = vmatprep.mubr.f32.mxu0 0.0
    %1033 = vmatmul.mubr.f32.gmra.mxu0 %v945
    %v1034 = vpop.f32.mrf.mxu0
    %v1035 = vadd.f32 %v907, %v1034
    %v1036 = vpop.f32.mrf.mxu0
    %1037 = vmatprep.mubr.f32.mxu0 0.0
    %1038 = vmatmul.mubr.f32.gmra.mxu0 %v948
    %v1039 = vpop.f32.mrf.mxu0
    %v1040 = vadd.f32 %v912, %v1039
    %v1041 = vpop.f32.mrf.mxu0
    %1042 = vmatprep.mubr.f32.mxu0 0.0
    %1043 = vmatmul.mubr.f32.gmra.mxu0 %v951
    %v1044 = vpop.f32.mrf.mxu0
    %v1045 = vadd.f32 %v917, %v1044
    %v1046 = vpop.f32.mrf.mxu0
    %1047 = vmatprep.mubr.f32.mxu0 0.0
    %1048 = vmatmul.mubr.f32.gmra.mxu0 %v954
    %v1049 = vpop.f32.mrf.mxu0
    %v1050 = vadd.f32 %v922, %v1049
    %v1051 = vpop.f32.mrf.mxu0
    %1052 = vmatprep.mubr.f32.mxu0 0.0
    %1053 = vmatmul.mubr.f32.gmra.mxu0 %v957
    %v1054 = vpop.f32.mrf.mxu0
    %v1055 = vadd.f32 %v927, %v1054
    %v1056 = vpop.f32.mrf.mxu0
    %1057 = vmatprep.mubr.f32.mxu0 0.0
    %1058 = vmatmul.mubr.f32.gmra.mxu0 %v960
    %v1059 = vpop.f32.mrf.mxu0
    %v1060 = vadd.f32 %v932, %v1059
    %v1061 = vpop.f32.mrf.mxu0
    %1062 = vmatprep.mubr.f32.mxu0 0.0
    %1063 = vmatmul.mubr.f32.gmra.mxu0 %v963
    %v1064 = vpop.f32.mrf.mxu0
    %v1065 = vadd.f32 %v937, %v1064
    %v1066 = vpop.f32.mrf.mxu0
    %1067 = vmatprep.mubr.f32.mxu0 0.0
    %1068 = vmatmul.mubr.f32.gmra.mxu0 %v966
    %v1069 = vpop.f32.mrf.mxu0
    %v1070 = vadd.f32 %v942, %v1069
    %v1071 = vpop.f32.mrf.mxu0
    %1072 = vdwg.mxu0
    %v1073 = vmul.f32 %v1035, 0.5
    %v1074 = vmul.f32 %v1040, 0.5
    %v1075 = vmul.f32 %v1045, 0.5
    %v1076 = vmul.f32 %v1050, 0.5
    %v1077 = vmul.f32 %v1055, 0.5
    %v1078 = vmul.f32 %v1060, 0.5
    %v1079 = vmul.f32 %v1065, 0.5
    %v1080 = vmul.f32 %v1070, 0.5
    %v1081 = vtanh.pop %v1073
    %v1082 = vtanh.pop %v1074
    %v1083 = vtanh.pop %v1075
    %v1084 = vtanh.pop %v1076
    %v1085 = vtanh.pop %v1077
    %v1086 = vtanh.pop %v1078
    %v1087 = vtanh.pop %v1079
    %v1088 = vtanh.pop %v1080
    %v1089 = vadd.f32 %v1081, 1.0
    %v1090 = vadd.f32 %v1082, 1.0
    %v1091 = vadd.f32 %v1083, 1.0
    %v1092 = vadd.f32 %v1084, 1.0
    %v1093 = vadd.f32 %v1085, 1.0
    %v1094 = vadd.f32 %v1086, 1.0
    %v1095 = vadd.f32 %v1087, 1.0
    %v1096 = vadd.f32 %v1088, 1.0
    %v1097 = vmul.f32 %v1073, %v1089
    %v1098 = vmul.f32 %v1074, %v1090
    %v1099 = vmul.f32 %v1075, %v1091
    %v1100 = vmul.f32 %v1076, %v1092
    %v1101 = vmul.f32 %v1077, %v1093
    %v1102 = vmul.f32 %v1078, %v1094
    %v1103 = vmul.f32 %v1079, %v1095
    %v1104 = vmul.f32 %v1080, %v1096
    %v1105 = vld [vmem:[%s5] sm:$0xff]
    %v1106 = vld [vmem:[%s5 + $0x8] sm:$0xff]
    %v1107 = vld [vmem:[%s5 + $0x10] sm:$0xff]
    %v1108 = vld [vmem:[%s5 + $0x18] sm:$0xff]
    %v1109 = vld [vmem:[%s5 + $0x20] sm:$0xff]
    %v1110 = vld [vmem:[%s5 + $0x28] sm:$0xff]
    %v1111 = vld [vmem:[%s5 + $0x30] sm:$0xff]
    %v1112 = vld [vmem:[%s5 + $0x38] sm:$0xff]
    %1114 = vset.pattern.permute.xlu0 0
    %1115 = vperm.xlu0 %1114, %v1105
    %v1116 = vpop.permute.xlu0 %1115
    %1119 = vset.pattern.permute.xlu0 0
    %1120 = vperm.xlu0 %1119, %v1106
    %v1121 = vpop.permute.xlu0 %1120
    %1124 = vset.pattern.permute.xlu0 0
    %1125 = vperm.xlu0 %1124, %v1107
    %v1126 = vpop.permute.xlu0 %1125
    %1129 = vset.pattern.permute.xlu0 0
    %1130 = vperm.xlu0 %1129, %v1108
    %v1131 = vpop.permute.xlu0 %1130
    %1134 = vset.pattern.permute.xlu0 0
    %1135 = vperm.xlu0 %1134, %v1109
    %v1136 = vpop.permute.xlu0 %1135
    %1139 = vset.pattern.permute.xlu0 0
    %1140 = vperm.xlu0 %1139, %v1110
    %v1141 = vpop.permute.xlu0 %1140
    %1144 = vset.pattern.permute.xlu0 0
    %1145 = vperm.xlu0 %1144, %v1111
    %v1146 = vpop.permute.xlu0 %1145
    %1149 = vset.pattern.permute.xlu0 0
    %1150 = vperm.xlu0 %1149, %v1112
    %v1151 = vpop.permute.xlu0 %1150
    %v1153 = vmul.f32 %v1097, %v1116
    %v1154 = vmul.f32 %v1098, %v1121
    %v1155 = vmul.f32 %v1099, %v1126
    %v1156 = vmul.f32 %v1100, %v1131
    %v1157 = vmul.f32 %v1101, %v1136
    %v1158 = vmul.f32 %v1102, %v1141
    %v1159 = vmul.f32 %v1103, %v1146
    %v1160 = vmul.f32 %v1104, %v1151
    %vm1161 = vcmask 64512
    %v1162 = vsel %vm1161, %v1153, 0.0
    %v1163 = vsel %vm1161, %v1154, 0.0
    %v1164 = vadd.f32 %v1162, %v1163
    %v1165 = vsel %vm1161, %v1155, 0.0
    %v1166 = vadd.f32 %v1164, %v1165
    %v1167 = vsel %vm1161, %v1156, 0.0
    %v1168 = vadd.f32 %v1166, %v1167
    %v1169 = vsel %vm1161, %v1157, 0.0
    %v1170 = vadd.f32 %v1168, %v1169
    %v1171 = vsel %vm1161, %v1158, 0.0
    %v1172 = vadd.f32 %v1170, %v1171
    %v1173 = vsel %vm1161, %v1159, 0.0
    %v1174 = vadd.f32 %v1172, %v1173
    %v1175 = vsel %vm1161, %v1160, 0.0
    %v1176 = vadd.f32 %v1174, %v1175
    %v1177 = vrot.slane %v1176, 4
    %v1178 = vadd.f32 %v1176, %v1177
    %v1179 = vrot.slane %v1178, 2
    %v1180 = vadd.f32 %v1178, %v1179
    %v1181 = vrot.slane %v1180, 1
    %v1182 = vadd.f32 %v1180, %v1181
    %v1183 = vld [vmem:[#allocation2] sm:$0x1]
    %1185 = vset.pattern.permute.xlu0 0
    %1186 = vperm.xlu0 %1185, %v1183
    %v1187 = vpop.permute.xlu0 %1186
    %v1189 = vlaneseq
    %v1190 = vshrl.u32 %v1189, 7
    %v1191 = vsub.s32 0, %v1190
    %v1192 = vrot.slane %v1187, %v1191
    %v1193 = vadd.f32 %v1182, %v1192
    %vm1194 = vcmask 57344
    %1195 = vst.msk [vmem:[#allocation3] sm:$0x1] %vm1194, %v1193
    // Predicated region
    $region30: #{tpu_custom_call.1} parent=1 // pred_check
      _
    $region31: #{tpu_custom_call.1} parent=1 // pred_check_branch
      %1197 = sbr.rel (0) target = $region33
    $region32: #{tpu_custom_call.1} parent=1 // pred_region
      %s1199 = ssub.s32 16, 16
      %1200 = vsyncadd [#allocation4], %s1199
      %s1202 = sshll.u32 [#allocation3], 4
      %s1203 = int_to_ptr.vmem [resolvable:$true] %s1202
      %1205 = dma.vmem_to_hbm [thread:$0]  %s1203, 16, %s7, [#allocation4]
    $region33: #{tpu_custom_call.1} parent=1 // pred_fallthru
      _
    // Predicated region
    $region34: #{tpu_custom_call.1} parent=1 // pred_check
      _
    $region35: #{tpu_custom_call.1} parent=1 // pred_check_branch
      %1207 = sbr.rel (0) target = $region37
    $region36: #{tpu_custom_call.1} parent=1 // pred_region
      %1208 = dma.done [#allocation4], 16
    $region37: #{tpu_custom_call.1} parent=1 // pred_fallthru
      _
    %1209 = vsyncpa [#allocation4], 1

</llo_original>
